<compile_context>
chip_gen: v6e
topology: v6e:2x2x1
jax: 0.10.0
libtpu: 0.0.40
codegen_flags: <defaults>
</compile_context>

<pallas_src>
import jax
import jax.numpy as jnp
from jax.experimental import pallas as pl
from jax.experimental.pallas import tpu as pltpu


def ffn_glu_kernel(x_ref, w1x_ref, b1x_ref, w1g_ref, b1g_ref,
                   w2_ref, b2_ref, mb_ref, o_ref):
    # x_ref:   (TM, D)        row tile
    # w1x_ref: (D, inner)     "x" half of project_in weight (pre-transposed)
    # w1g_ref: (D, inner)     "gate" half of project_in weight
    # b1x/b1g: (1, inner)     f32 biases
    # w2_ref:  (inner, d_out) output projection (pre-transposed)
    # b2_ref:  (1, d_out)     f32 bias
    # mb_ref:  (1, inner)     mult_bias parameter (f32)
    x = x_ref[...]

    # project_in, split into the two GLU halves: avoids the (TM, 2*inner)
    # intermediate and the two lane slices.  MXU accumulates in f32.
    gate = jnp.dot(x, w1g_ref[...], preferred_element_type=jnp.float32) + b1g_ref[...]
    xp = jnp.dot(x, w1x_ref[...], preferred_element_type=jnp.float32) + b1x_ref[...]

    # GLU: xp * SiLU(gate) * mult_bias -- kept in f32 (sigmoid goes to the EUP slot).
    a = xp * (gate * jax.nn.sigmoid(gate)) * mb_ref[...]

    # post_act_ln = Identity, dropout = 0.0 -> nothing to do.
    # Output projection; cast activations to the weight dtype (bf16 path) for the MXU.
    y = jnp.dot(a.astype(w2_ref.dtype), w2_ref[...],
                preferred_element_type=jnp.float32) + b2_ref[...]
    o_ref[...] = y.astype(o_ref.dtype)


def boring_feedforward(x, w1, b1, w2, b2, mult_bias, *, tm=512, compute_dtype=None):
    """x: (B, S, d_model).  w1: (d_model, 2*inner), w2: (inner, d_out) -- (in, out) layout.

    compute_dtype: dtype used for the matmul operands (e.g. jnp.bfloat16 to halve
    HBM traffic on v6e/v7x).  Accumulation and elementwise math stay f32.
    """
    B, S, D = x.shape
    inner = w2.shape[0]
    d_out = w2.shape[1]
    R = B * S
    cdt = compute_dtype if compute_dtype is not None else x.dtype

    # Split project_in weight into the GLU "x" and "gate" halves (torch chunk order).
    w1_x, w1_g = w1[:, :inner], w1[:, inner:]
    b1_x, b1_g = b1[:inner], b1[inner:]

    # Row tile: multiple of 8 (sublane), no larger than the (padded) row count.
    tm_eff = min(tm, pl.cdiv(R, 8) * 8)
    tm_eff = max(8, (tm_eff // 8) * 8)
    r_pad = pl.cdiv(R, tm_eff) * tm_eff

    x2d = x.reshape(R, D).astype(cdt)
    if r_pad != R:
        x2d = jnp.pad(x2d, ((0, r_pad - R), (0, 0)))

    grid = (r_pad // tm_eff,)

    # Weights/biases: full-array VMEM blocks, same block every grid step -> resident.
    full = lambda shape: pl.BlockSpec(shape, lambda i: (0,) * len(shape))

    out = pl.pallas_call(
        ffn_glu_kernel,
        out_shape=jax.ShapeDtypeStruct((r_pad, d_out), x.dtype),
        grid=grid,
        in_specs=[
            pl.BlockSpec((tm_eff, D), lambda i: (i, 0)),      # x row tile
            full((D, inner)),                                 # w1_x
            full((1, inner)),                                 # b1_x
            full((D, inner)),                                 # w1_gate
            full((1, inner)),                                 # b1_gate
            full((inner, d_out)),                             # w2
            full((1, d_out)),                                 # b2
            full((1, inner)),                                 # mult_bias
        ],
        out_specs=pl.BlockSpec((tm_eff, d_out), lambda i: (i, 0)),
        compiler_params=pltpu.CompilerParams(
            dimension_semantics=("parallel",),                # megacore-shard rows (v7x)
            vmem_limit_bytes=32 * 1024 * 1024,                # fits v7x 64 MiB physical
        ),
    )(
        x2d,
        w1_x.astype(cdt), b1_x[None, :].astype(jnp.float32),
        w1_g.astype(cdt), b1_g[None, :].astype(jnp.float32),
        w2.astype(cdt), b2[None, :].astype(jnp.float32),
        mult_bias[None, :].astype(jnp.float32),
    )
    return out[:R].reshape(B, S, d_out)


def reference(x, w1, b1, w2, b2, mult_bias):
    inner = w2.shape[0]
    h = jnp.einsum("bsd,de->bse", x, w1) + b1
    xp, gate = h[..., :inner], h[..., inner:]
    a = xp * (gate * jax.nn.sigmoid(gate)) * mult_bias
    return jnp.einsum("bse,eo->bso", a, w2) + b2


if __name__ == "__main__":
    d_model = 32
    mult_dim = 4
    inner = d_model * mult_dim        # 128
    d_out = d_model                   # ffn_dim_out defaults to d_model
    B, S = 2, 8

    key = jax.random.PRNGKey(0)
    kx, k1, kb1, k2, kb2 = jax.random.split(key, 5)

    x = jax.random.normal(kx, (B, S, d_model), dtype=jnp.float32)
    # nn.Linear-style init, stored pre-transposed as (in, out)
    w1 = jax.random.normal(k1, (d_model, 2 * inner), dtype=jnp.float32) * (1.0 / jnp.sqrt(d_model))
    b1 = jax.random.normal(kb1, (2 * inner,), dtype=jnp.float32) * 0.01
    w2 = jax.random.normal(k2, (inner, d_out), dtype=jnp.float32) * (1.0 / jnp.sqrt(inner))
    b2 = jax.random.normal(kb2, (d_out,), dtype=jnp.float32) * 0.01
    mult_bias = jnp.ones((inner,), dtype=jnp.float32)  # nn.Parameter(torch.ones(dim_out))

    y_ref = reference(x, w1, b1, w2, b2, mult_bias)

    # f32 path: exact match to the PyTorch module semantics.
    y = boring_feedforward(x, w1, b1, w2, b2, mult_bias)
    y = jax.block_until_ready(y)
    assert y.shape == (B, S, d_out)
    assert jnp.allclose(y, y_ref, atol=1e-4, rtol=1e-4), "f32 mismatch vs reference"

    # bf16 matmul path (v6e/v7x memory-bandwidth optimization); looser tolerance.
    y_bf16 = boring_feedforward(x, w1, b1, w2, b2, mult_bias, compute_dtype=jnp.bfloat16)
    y_bf16 = jax.block_until_ready(y_bf16)
    assert jnp.allclose(y_bf16, y_ref, atol=5e-2, rtol=5e-2), "bf16 mismatch vs reference"

    print("KERNEL_OK")
</pallas_src>

<mosaic_0001>
module attributes {stable_mosaic.version = 11 : i64} {
  func.func @ffn_glu_kernel(%arg0: i32, %arg1: memref<16x32xf32, #tpu.memory_space<vmem>>, %arg2: memref<32x128xf32, #tpu.memory_space<vmem>>, %arg3: memref<1x128xf32, #tpu.memory_space<vmem>>, %arg4: memref<32x128xf32, #tpu.memory_space<vmem>>, %arg5: memref<1x128xf32, #tpu.memory_space<vmem>>, %arg6: memref<128x32xf32, #tpu.memory_space<vmem>>, %arg7: memref<1x32xf32, #tpu.memory_space<vmem>>, %arg8: memref<1x128xf32, #tpu.memory_space<vmem>>, %arg9: memref<16x32xf32, #tpu.memory_space<vmem>>) attributes {dimension_semantics = [#tpu.dimension_semantics<parallel>], iteration_bounds = array<i64: 1>, scalar_prefetch = 0 : i64, scratch_operands = 0 : i64, tpu.core_type = #tpu.core_type<tc>, window_params = [{transform_indices = @transform_0, window_bounds = array<i64: 16, 32>}, {pipeline_mode = #tpu.pipeline_mode<synchronous>, transform_indices = @transform_1, window_bounds = array<i64: 32, 128>}, {pipeline_mode = #tpu.pipeline_mode<synchronous>, transform_indices = @transform_2, window_bounds = array<i64: 1, 128>}, {pipeline_mode = #tpu.pipeline_mode<synchronous>, transform_indices = @transform_3, window_bounds = array<i64: 32, 128>}, {pipeline_mode = #tpu.pipeline_mode<synchronous>, transform_indices = @transform_4, window_bounds = array<i64: 1, 128>}, {pipeline_mode = #tpu.pipeline_mode<synchronous>, transform_indices = @transform_5, window_bounds = array<i64: 128, 32>}, {pipeline_mode = #tpu.pipeline_mode<synchronous>, transform_indices = @transform_6, window_bounds = array<i64: 1, 32>}, {pipeline_mode = #tpu.pipeline_mode<synchronous>, transform_indices = @transform_7, window_bounds = array<i64: 1, 128>}, {transform_indices = @transform_8, window_bounds = array<i64: 16, 32>}]} {
    %c0 = arith.constant 0 : index
    %c0_0 = arith.constant 0 : index
    %0 = vector.load %arg1[%c0, %c0_0] : memref<16x32xf32, #tpu.memory_space<vmem>>, vector<16x32xf32>
    %c0_1 = arith.constant 0 : index
    %c0_2 = arith.constant 0 : index
    %1 = vector.load %arg4[%c0_1, %c0_2] : memref<32x128xf32, #tpu.memory_space<vmem>>, vector<32x128xf32>
    %cst = arith.constant dense<0.000000e+00> : vector<16x128xf32>
    %2 = tpu.matmul %0, %1, %cst {dimension_numbers = #tpu.dot_dimension_numbers<[1], [0], [0], [1], [0, 0, 1, 1], [], []>} : vector<16x32xf32>, vector<32x128xf32>, vector<16x128xf32> -> vector<16x128xf32>
    %c0_3 = arith.constant 0 : index
    %c0_4 = arith.constant 0 : index
    %3 = vector.load %arg5[%c0_3, %c0_4] : memref<1x128xf32, #tpu.memory_space<vmem>>, vector<1x128xf32>
    %4 = vector.broadcast %3 : vector<1x128xf32> to vector<16x128xf32>
    %5 = arith.addf %2, %4 : vector<16x128xf32>
    %c0_5 = arith.constant 0 : index
    %c0_6 = arith.constant 0 : index
    %6 = vector.load %arg2[%c0_5, %c0_6] : memref<32x128xf32, #tpu.memory_space<vmem>>, vector<32x128xf32>
    %cst_7 = arith.constant dense<0.000000e+00> : vector<16x128xf32>
    %7 = tpu.matmul %0, %6, %cst_7 {dimension_numbers = #tpu.dot_dimension_numbers<[1], [0], [0], [1], [0, 0, 1, 1], [], []>} : vector<16x32xf32>, vector<32x128xf32>, vector<16x128xf32> -> vector<16x128xf32>
    %c0_8 = arith.constant 0 : index
    %c0_9 = arith.constant 0 : index
    %8 = vector.load %arg3[%c0_8, %c0_9] : memref<1x128xf32, #tpu.memory_space<vmem>>, vector<1x128xf32>
    %9 = vector.broadcast %8 : vector<1x128xf32> to vector<16x128xf32>
    %10 = arith.addf %7, %9 : vector<16x128xf32>
    %11 = arith.negf %5 : vector<16x128xf32>
    %12 = math.exp %11 : vector<16x128xf32>
    %cst_10 = arith.constant 1.000000e+00 : f32
    %13 = vector.broadcast %cst_10 : f32 to vector<16x128xf32>
    %14 = arith.addf %13, %12 : vector<16x128xf32>
    %15 = arith.divf %13, %14 : vector<16x128xf32>
    %16 = arith.mulf %5, %15 : vector<16x128xf32>
    %17 = arith.mulf %10, %16 : vector<16x128xf32>
    %c0_11 = arith.constant 0 : index
    %c0_12 = arith.constant 0 : index
    %18 = vector.load %arg8[%c0_11, %c0_12] : memref<1x128xf32, #tpu.memory_space<vmem>>, vector<1x128xf32>
    %19 = vector.broadcast %18 : vector<1x128xf32> to vector<16x128xf32>
    %20 = arith.mulf %17, %19 : vector<16x128xf32>
    %c0_13 = arith.constant 0 : index
    %c0_14 = arith.constant 0 : index
    %21 = vector.load %arg6[%c0_13, %c0_14] : memref<128x32xf32, #tpu.memory_space<vmem>>, vector<128x32xf32>
    %cst_15 = arith.constant dense<0.000000e+00> : vector<16x32xf32>
    %22 = tpu.matmul %20, %21, %cst_15 {dimension_numbers = #tpu.dot_dimension_numbers<[1], [0], [0], [1], [0, 0, 1, 1], [], []>} : vector<16x128xf32>, vector<128x32xf32>, vector<16x32xf32> -> vector<16x32xf32>
    %c0_16 = arith.constant 0 : index
    %c0_17 = arith.constant 0 : index
    %23 = vector.load %arg7[%c0_16, %c0_17] : memref<1x32xf32, #tpu.memory_space<vmem>>, vector<1x32xf32>
    %24 = vector.broadcast %23 : vector<1x32xf32> to vector<16x32xf32>
    %25 = arith.addf %22, %24 : vector<16x32xf32>
    %c0_18 = arith.constant 0 : index
    %c0_19 = arith.constant 0 : index
    %26 = vector.load %arg9[%c0_18, %c0_19] : memref<16x32xf32, #tpu.memory_space<vmem>>, vector<16x32xf32>
    tpu.vector_store %arg9[%c0_18, %c0_19], %25 {strides = array<i32>} : memref<16x32xf32, #tpu.memory_space<vmem>>, vector<16x32xf32>,
    return
  }
  func.func @transform_0(%arg0: i32) -> (i32, i32) {
    %c0_i32 = arith.constant 0 : i32
    %c0_i32_0 = arith.constant 0 : i32
    return %arg0, %c0_i32 : i32, i32
  }
  func.func @transform_1(%arg0: i32) -> (i32, i32) {
    %c0_i32 = arith.constant 0 : i32
    %c0_i32_0 = arith.constant 0 : i32
    %c0_i32_1 = arith.constant 0 : i32
    return %c0_i32, %c0_i32_0 : i32, i32
  }
  func.func @transform_2(%arg0: i32) -> (i32, i32) {
    %c0_i32 = arith.constant 0 : i32
    %c0_i32_0 = arith.constant 0 : i32
    %c0_i32_1 = arith.constant 0 : i32
    return %c0_i32, %c0_i32_0 : i32, i32
  }
  func.func @transform_3(%arg0: i32) -> (i32, i32) {
    %c0_i32 = arith.constant 0 : i32
    %c0_i32_0 = arith.constant 0 : i32
    %c0_i32_1 = arith.constant 0 : i32
    return %c0_i32, %c0_i32_0 : i32, i32
  }
  func.func @transform_4(%arg0: i32) -> (i32, i32) {
    %c0_i32 = arith.constant 0 : i32
    %c0_i32_0 = arith.constant 0 : i32
    %c0_i32_1 = arith.constant 0 : i32
    return %c0_i32, %c0_i32_0 : i32, i32
  }
  func.func @transform_5(%arg0: i32) -> (i32, i32) {
    %c0_i32 = arith.constant 0 : i32
    %c0_i32_0 = arith.constant 0 : i32
    %c0_i32_1 = arith.constant 0 : i32
    return %c0_i32, %c0_i32_0 : i32, i32
  }
  func.func @transform_6(%arg0: i32) -> (i32, i32) {
    %c0_i32 = arith.constant 0 : i32
    %c0_i32_0 = arith.constant 0 : i32
    %c0_i32_1 = arith.constant 0 : i32
    return %c0_i32, %c0_i32_0 : i32, i32
  }
  func.func @transform_7(%arg0: i32) -> (i32, i32) {
    %c0_i32 = arith.constant 0 : i32
    %c0_i32_0 = arith.constant 0 : i32
    %c0_i32_1 = arith.constant 0 : i32
    return %c0_i32, %c0_i32_0 : i32, i32
  }
  func.func @transform_8(%arg0: i32) -> (i32, i32) {
    %c0_i32 = arith.constant 0 : i32
    %c0_i32_0 = arith.constant 0 : i32
    return %arg0, %c0_i32 : i32, i32
  }
}

</mosaic_0001>

<llo_original>
// kernel: tpu_custom_call.1
$region0: #{tpu_custom_call.1}
  #allocation0 [shape = 'u32[]', space=smem, size = 0x4, offset = 0x4, fixed_abs, tag = 'smem constant byte address 0x4 - core index']
  #allocation1 [shape = 'u32[144,128]{1,0:T(1,128)}', space=vmem, size = 0x12000, scoped, tag = 'internal scratch']
  %s0 = inlined_call_operand.vmem [shape: f32[16,32], index: 0, kind: input, shape index: {}]
  %s1 = inlined_call_operand.vmem [shape: f32[32,128], index: 1, kind: input, shape index: {}]
  %s2 = inlined_call_operand.vmem [shape: f32[1,128], index: 2, kind: input, shape index: {}]
  %s3 = inlined_call_operand.vmem [shape: f32[32,128], index: 3, kind: input, shape index: {}]
  %s4 = inlined_call_operand.vmem [shape: f32[1,128], index: 4, kind: input, shape index: {}]
  %s5 = inlined_call_operand.vmem [shape: f32[128,32], index: 5, kind: input, shape index: {}]
  %s6 = inlined_call_operand.vmem [shape: f32[1,32], index: 6, kind: input, shape index: {}]
  %s7 = inlined_call_operand.vmem [shape: f32[1,128], index: 7, kind: input, shape index: {}]
  %s8 = inlined_call_operand.hbm [shape: f32[16,32], index: 8, kind: output, shape index: {}]
  %s9 = sld [smem:[#allocation0]]
  $region42: #{tpu_custom_call.1} parent=0
    _
  %s11 = ssub.s32 1, %s9
  %s12 = scalar_select 0, %s11, %s9
  $region1: #{tpu_custom_call.1} parent=0
    #allocation2 [shape = 'u8[8192]{0}', space=vmem, size = 0x2000, scoped, tag = 'output window, operand 0, single buffered']
    #allocation3 [shape = 's32[1]{0}', space=sflag, size = 0x4, scoped, tag = 'scoped memory for tpu_custom_call.1']
    %13 = vsyncpa [#allocation3], 0
    // Predicated region
    $region2: #{tpu_custom_call.1} parent=1 // pred_check
      _
    $region3: #{tpu_custom_call.1} parent=1 // pred_check_branch
      %15 = sbr.rel (0) target = $region5
    $region4: #{tpu_custom_call.1} parent=1 // pred_region
      _
    $region5: #{tpu_custom_call.1} parent=1 // pred_fallthru
      _
    // Predicated region
    $region6: #{tpu_custom_call.1} parent=1 // pred_check
      _
    $region7: #{tpu_custom_call.1} parent=1 // pred_check_branch
      %17 = sbr.rel (0) target = $region9
    $region8: #{tpu_custom_call.1} parent=1 // pred_region
      _
    $region9: #{tpu_custom_call.1} parent=1 // pred_fallthru
      _
    // Predicated region
    $region10: #{tpu_custom_call.1} parent=1 // pred_check
      _
    $region11: #{tpu_custom_call.1} parent=1 // pred_check_branch
      %19 = sbr.rel (0) target = $region13
    $region12: #{tpu_custom_call.1} parent=1 // pred_region
      _
    $region13: #{tpu_custom_call.1} parent=1 // pred_fallthru
      _
    // Predicated region
    $region14: #{tpu_custom_call.1} parent=1 // pred_check
      _
    $region15: #{tpu_custom_call.1} parent=1 // pred_check_branch
      %21 = sbr.rel (0) target = $region17
    $region16: #{tpu_custom_call.1} parent=1 // pred_region
      _
    $region17: #{tpu_custom_call.1} parent=1 // pred_fallthru
      _
    // Predicated region
    $region18: #{tpu_custom_call.1} parent=1 // pred_check
      _
    $region19: #{tpu_custom_call.1} parent=1 // pred_check_branch
      %23 = sbr.rel (0) target = $region21
    $region20: #{tpu_custom_call.1} parent=1 // pred_region
      _
    $region21: #{tpu_custom_call.1} parent=1 // pred_fallthru
      _
    // Predicated region
    $region22: #{tpu_custom_call.1} parent=1 // pred_check
      _
    $region23: #{tpu_custom_call.1} parent=1 // pred_check_branch
      %25 = sbr.rel (0) target = $region25
    $region24: #{tpu_custom_call.1} parent=1 // pred_region
      _
    $region25: #{tpu_custom_call.1} parent=1 // pred_fallthru
      _
    // Predicated region
    $region26: #{tpu_custom_call.1} parent=1 // pred_check
      _
    $region27: #{tpu_custom_call.1} parent=1 // pred_check_branch
      %27 = sbr.rel (0) target = $region29
    $region28: #{tpu_custom_call.1} parent=1 // pred_region
      _
    $region29: #{tpu_custom_call.1} parent=1 // pred_fallthru
      _
    // Predicated region
    $region30: #{tpu_custom_call.1} parent=1 // pred_check
      _
    $region31: #{tpu_custom_call.1} parent=1 // pred_check_branch
      %29 = sbr.rel (0) target = $region33
    $region32: #{tpu_custom_call.1} parent=1 // pred_region
      _
    $region33: #{tpu_custom_call.1} parent=1 // pred_fallthru
      _
    %v30 = vld [vmem:[%s0] sm:$0xff]
    %v31 = vld [vmem:[%s0 + $0x8] sm:$0xff]
    %v32 = vld [vmem:[%s3] sm:$0xff]
    %v33 = vld [vmem:[%s3 + $0x8] sm:$0xff]
    %v34 = vld [vmem:[%s3 + $0x10] sm:$0xff]
    %v35 = vld [vmem:[%s3 + $0x18] sm:$0xff]
    %v36 = vld [vmem:[%s4] sm:$0x1]
    %v38 = vlaneseq
    %v39 = vshrl.u32 %v38, 7
    %v40 = vsub.s32 0, %v39
    %v41 = vrot.slane %v36, %v40
    %vm43 = vcmask 261120
    %v45 = vsel %vm43, %v30, 0
    %v48 = vsel %vm43, %v31, 0
    %50 = vmatprep.subr.mxu0 0.0
    %51 = vmatpush1.msra.mxu0 0.0
    %52 = vmatprep.subr.mxu0 0.0
    %53 = vmatpush1.msra.mxu0 0.0
    %54 = vmatprep.subr.mxu0 0.0
    %55 = vmatpush1.msra.mxu0 0.0
    %56 = vmatprep.subr.mxu0 0.0
    %57 = vmatpush1.msra.mxu0 0.0
    %58 = vmatprep.subr.mxu0 0.0
    %59 = vmatpush1.msra.mxu0 0.0
    %60 = vmatprep.subr.mxu0 0.0
    %61 = vmatpush1.msra.mxu0 0.0
    %62 = vmatprep.subr.mxu0 0.0
    %63 = vmatpush1.msra.mxu0 0.0
    %64 = vmatprep.subr.mxu0 0.0
    %65 = vmatpush1.msra.mxu0 0.0
    %66 = vmatprep.subr.mxu0 0.0
    %67 = vmatpush1.msra.mxu0 0.0
    %68 = vmatprep.subr.mxu0 0.0
    %69 = vmatpush1.msra.mxu0 0.0
    %70 = vmatprep.subr.mxu0 0.0
    %71 = vmatpush1.msra.mxu0 0.0
    %72 = vmatprep.subr.mxu0 0.0
    %73 = vmatpush1.msra.mxu0 0.0
    %74 = vmatprep.subr.mxu0 0.0
    %75 = vmatpush1.msra.mxu0 %v35
    %76 = vmatprep.subr.mxu0 0.0
    %77 = vmatpush1.msra.mxu0 %v34
    %78 = vmatprep.subr.mxu0 0.0
    %79 = vmatpush1.msra.mxu0 %v33
    %80 = vmatprep.subr.mxu0 0.0
    %81 = vmatpush1.msra.mxu0 %v32
    %82 = vmatprep.subr.mxu0 0.0
    %83 = vmatpush2.msra.mxu0 0.0
    %84 = vmatprep.subr.mxu0 0.0
    %85 = vmatpush2.msra.mxu0 0.0
    %86 = vmatprep.subr.mxu0 0.0
    %87 = vmatpush2.msra.mxu0 0.0
    %88 = vmatprep.subr.mxu0 0.0
    %89 = vmatpush2.msra.mxu0 0.0
    %90 = vmatprep.subr.mxu0 0.0
    %91 = vmatpush2.msra.mxu0 0.0
    %92 = vmatprep.subr.mxu0 0.0
    %93 = vmatpush2.msra.mxu0 0.0
    %94 = vmatprep.subr.mxu0 0.0
    %95 = vmatpush2.msra.mxu0 0.0
    %96 = vmatprep.subr.mxu0 0.0
    %97 = vmatpush2.msra.mxu0 0.0
    %98 = vmatprep.subr.mxu0 0.0
    %99 = vmatpush2.msra.mxu0 0.0
    %100 = vmatprep.subr.mxu0 0.0
    %101 = vmatpush2.msra.mxu0 0.0
    %102 = vmatprep.subr.mxu0 0.0
    %103 = vmatpush2.msra.mxu0 0.0
    %104 = vmatprep.subr.mxu0 0.0
    %105 = vmatpush2.msra.mxu0 0.0
    %106 = vmatprep.subr.mxu0 0.0
    %107 = vmatpush2.msra.mxu0 0.0
    %108 = vmatprep.subr.mxu0 0.0
    %109 = vmatpush2.msra.mxu0 0.0
    %110 = vmatprep.subr.mxu0 0.0
    %111 = vmatpush2.msra.mxu0 0.0
    %112 = vmatprep.subr.mxu0 0.0
    %113 = vmatpush2.msra.mxu0 0.0
    %114 = vmatprep.mubr.f32.mxu0 0.0
    %115 = vmatmul.mubr.f32.gmra.mxu0 %v45
    %v116 = vpop.f32.mrf.mxu0
    %v117 = vadd.f32 %v41, %v116
    %v118 = vpop.f32.mrf.mxu0
    %119 = vmatprep.mubr.f32.mxu0 0.0
    %120 = vmatmul.mubr.f32.gmra.mxu0 %v48
    %v121 = vpop.f32.mrf.mxu0
    %v122 = vadd.f32 %v41, %v121
    %v123 = vpop.f32.mrf.mxu0
    %124 = vdwg.mxu0
    %v125 = vld [vmem:[%s1] sm:$0xff]
    %v126 = vld [vmem:[%s1 + $0x8] sm:$0xff]
    %v127 = vld [vmem:[%s1 + $0x10] sm:$0xff]
    %v128 = vld [vmem:[%s1 + $0x18] sm:$0xff]
    %v129 = vld [vmem:[%s2] sm:$0x1]
    %v131 = vlaneseq
    %v132 = vshrl.u32 %v131, 7
    %v133 = vsub.s32 0, %v132
    %v134 = vrot.slane %v129, %v133
    %136 = vmatprep.subr.mxu0 0.0
    %137 = vmatpush1.msra.mxu0 0.0
    %138 = vmatprep.subr.mxu0 0.0
    %139 = vmatpush1.msra.mxu0 0.0
    %140 = vmatprep.subr.mxu0 0.0
    %141 = vmatpush1.msra.mxu0 0.0
    %142 = vmatprep.subr.mxu0 0.0
    %143 = vmatpush1.msra.mxu0 0.0
    %144 = vmatprep.subr.mxu0 0.0
    %145 = vmatpush1.msra.mxu0 0.0
    %146 = vmatprep.subr.mxu0 0.0
    %147 = vmatpush1.msra.mxu0 0.0
    %148 = vmatprep.subr.mxu0 0.0
    %149 = vmatpush1.msra.mxu0 0.0
    %150 = vmatprep.subr.mxu0 0.0
    %151 = vmatpush1.msra.mxu0 0.0
    %152 = vmatprep.subr.mxu0 0.0
    %153 = vmatpush1.msra.mxu0 0.0
    %154 = vmatprep.subr.mxu0 0.0
    %155 = vmatpush1.msra.mxu0 0.0
    %156 = vmatprep.subr.mxu0 0.0
    %157 = vmatpush1.msra.mxu0 0.0
    %158 = vmatprep.subr.mxu0 0.0
    %159 = vmatpush1.msra.mxu0 0.0
    %160 = vmatprep.subr.mxu0 0.0
    %161 = vmatpush1.msra.mxu0 %v128
    %162 = vmatprep.subr.mxu0 0.0
    %163 = vmatpush1.msra.mxu0 %v127
    %164 = vmatprep.subr.mxu0 0.0
    %165 = vmatpush1.msra.mxu0 %v126
    %166 = vmatprep.subr.mxu0 0.0
    %167 = vmatpush1.msra.mxu0 %v125
    %168 = vmatprep.subr.mxu0 0.0
    %169 = vmatpush2.msra.mxu0 0.0
    %170 = vmatprep.subr.mxu0 0.0
    %171 = vmatpush2.msra.mxu0 0.0
    %172 = vmatprep.subr.mxu0 0.0
    %173 = vmatpush2.msra.mxu0 0.0
    %174 = vmatprep.subr.mxu0 0.0
    %175 = vmatpush2.msra.mxu0 0.0
    %176 = vmatprep.subr.mxu0 0.0
    %177 = vmatpush2.msra.mxu0 0.0
    %178 = vmatprep.subr.mxu0 0.0
    %179 = vmatpush2.msra.mxu0 0.0
    %180 = vmatprep.subr.mxu0 0.0
    %181 = vmatpush2.msra.mxu0 0.0
    %182 = vmatprep.subr.mxu0 0.0
    %183 = vmatpush2.msra.mxu0 0.0
    %184 = vmatprep.subr.mxu0 0.0
    %185 = vmatpush2.msra.mxu0 0.0
    %186 = vmatprep.subr.mxu0 0.0
    %187 = vmatpush2.msra.mxu0 0.0
    %188 = vmatprep.subr.mxu0 0.0
    %189 = vmatpush2.msra.mxu0 0.0
    %190 = vmatprep.subr.mxu0 0.0
    %191 = vmatpush2.msra.mxu0 0.0
    %192 = vmatprep.subr.mxu0 0.0
    %193 = vmatpush2.msra.mxu0 0.0
    %194 = vmatprep.subr.mxu0 0.0
    %195 = vmatpush2.msra.mxu0 0.0
    %196 = vmatprep.subr.mxu0 0.0
    %197 = vmatpush2.msra.mxu0 0.0
    %198 = vmatprep.subr.mxu0 0.0
    %199 = vmatpush2.msra.mxu0 0.0
    %200 = vmatprep.mubr.f32.mxu0 0.0
    %201 = vmatmul.mubr.f32.gmra.mxu0 %v45
    %v202 = vpop.f32.mrf.mxu0
    %v203 = vadd.f32 %v134, %v202
    %v204 = vpop.f32.mrf.mxu0
    %205 = vmatprep.mubr.f32.mxu0 0.0
    %206 = vmatmul.mubr.f32.gmra.mxu0 %v48
    %v207 = vpop.f32.mrf.mxu0
    %v208 = vadd.f32 %v134, %v207
    %v209 = vpop.f32.mrf.mxu0
    %210 = vdwg.mxu0
    %v211 = vxor.u32 %v117, 2147483648
    %v212 = vxor.u32 %v122, 2147483648
    %v213 = vmul.f32 %v211, 1.442695
    %v214 = vpow.pop %v213
    %v215 = vmul.f32 %v212, 1.442695
    %v216 = vpow.pop %v215
    %v217 = vadd.f32 %v214, 1.0
    %v218 = vadd.f32 %v216, 1.0
    %v219 = vrcp.pop %v217
    %v220 = vmul.f32 1.0, %v219
    %v221 = vrcp.pop %v218
    %v222 = vmul.f32 1.0, %v221
    %v223 = vmul.f32 %v117, %v220
    %v224 = vmul.f32 %v122, %v222
    %v225 = vmul.f32 %v203, %v223
    %v226 = vmul.f32 %v208, %v224
    %v227 = vld [vmem:[%s7] sm:$0x1]
    %v229 = vlaneseq
    %v230 = vshrl.u32 %v229, 7
    %v231 = vsub.s32 0, %v230
    %v232 = vrot.slane %v227, %v231
    %v234 = vmul.f32 %v225, %v232
    %v235 = vmul.f32 %v226, %v232
    %v236 = vld [vmem:[%s5] sm:$0xff]
    %v237 = vld [vmem:[%s5 + $0x8] sm:$0xff]
    %v238 = vld [vmem:[%s5 + $0x10] sm:$0xff]
    %v239 = vld [vmem:[%s5 + $0x18] sm:$0xff]
    %v240 = vld [vmem:[%s5 + $0x20] sm:$0xff]
    %v241 = vld [vmem:[%s5 + $0x28] sm:$0xff]
    %v242 = vld [vmem:[%s5 + $0x30] sm:$0xff]
    %v243 = vld [vmem:[%s5 + $0x38] sm:$0xff]
    %v244 = vld [vmem:[%s5 + $0x40] sm:$0xff]
    %v245 = vld [vmem:[%s5 + $0x48] sm:$0xff]
    %v246 = vld [vmem:[%s5 + $0x50] sm:$0xff]
    %v247 = vld [vmem:[%s5 + $0x58] sm:$0xff]
    %v248 = vld [vmem:[%s5 + $0x60] sm:$0xff]
    %v249 = vld [vmem:[%s5 + $0x68] sm:$0xff]
    %v250 = vld [vmem:[%s5 + $0x70] sm:$0xff]
    %v251 = vld [vmem:[%s5 + $0x78] sm:$0xff]
    %v252 = vld [vmem:[%s6] sm:$0x1]
    %v254 = vlaneseq
    %v255 = vshrl.u32 %v254, 7
    %v256 = vsub.s32 0, %v255
    %v257 = vrot.slane %v252, %v256
    %259 = vmatprep.subr.mxu0 0.0
    %260 = vmatpush1.msra.mxu0 %v251
    %261 = vmatprep.subr.mxu0 0.0
    %262 = vmatpush1.msra.mxu0 %v250
    %263 = vmatprep.subr.mxu0 0.0
    %264 = vmatpush1.msra.mxu0 %v249
    %265 = vmatprep.subr.mxu0 0.0
    %266 = vmatpush1.msra.mxu0 %v248
    %267 = vmatprep.subr.mxu0 0.0
    %268 = vmatpush1.msra.mxu0 %v247
    %269 = vmatprep.subr.mxu0 0.0
    %270 = vmatpush1.msra.mxu0 %v246
    %271 = vmatprep.subr.mxu0 0.0
    %272 = vmatpush1.msra.mxu0 %v245
    %273 = vmatprep.subr.mxu0 0.0
    %274 = vmatpush1.msra.mxu0 %v244
    %275 = vmatprep.subr.mxu0 0.0
    %276 = vmatpush1.msra.mxu0 %v243
    %277 = vmatprep.subr.mxu0 0.0
    %278 = vmatpush1.msra.mxu0 %v242
    %279 = vmatprep.subr.mxu0 0.0
    %280 = vmatpush1.msra.mxu0 %v241
    %281 = vmatprep.subr.mxu0 0.0
    %282 = vmatpush1.msra.mxu0 %v240
    %283 = vmatprep.subr.mxu0 0.0
    %284 = vmatpush1.msra.mxu0 %v239
    %285 = vmatprep.subr.mxu0 0.0
    %286 = vmatpush1.msra.mxu0 %v238
    %287 = vmatprep.subr.mxu0 0.0
    %288 = vmatpush1.msra.mxu0 %v237
    %289 = vmatprep.subr.mxu0 0.0
    %290 = vmatpush1.msra.mxu0 %v236
    %291 = vmatprep.subr.mxu0 0.0
    %292 = vmatpush2.msra.mxu0 0.0
    %293 = vmatprep.subr.mxu0 0.0
    %294 = vmatpush2.msra.mxu0 0.0
    %295 = vmatprep.subr.mxu0 0.0
    %296 = vmatpush2.msra.mxu0 0.0
    %297 = vmatprep.subr.mxu0 0.0
    %298 = vmatpush2.msra.mxu0 0.0
    %299 = vmatprep.subr.mxu0 0.0
    %300 = vmatpush2.msra.mxu0 0.0
    %301 = vmatprep.subr.mxu0 0.0
    %302 = vmatpush2.msra.mxu0 0.0
    %303 = vmatprep.subr.mxu0 0.0
    %304 = vmatpush2.msra.mxu0 0.0
    %305 = vmatprep.subr.mxu0 0.0
    %306 = vmatpush2.msra.mxu0 0.0
    %307 = vmatprep.subr.mxu0 0.0
    %308 = vmatpush2.msra.mxu0 0.0
    %309 = vmatprep.subr.mxu0 0.0
    %310 = vmatpush2.msra.mxu0 0.0
    %311 = vmatprep.subr.mxu0 0.0
    %312 = vmatpush2.msra.mxu0 0.0
    %313 = vmatprep.subr.mxu0 0.0
    %314 = vmatpush2.msra.mxu0 0.0
    %315 = vmatprep.subr.mxu0 0.0
    %316 = vmatpush2.msra.mxu0 0.0
    %317 = vmatprep.subr.mxu0 0.0
    %318 = vmatpush2.msra.mxu0 0.0
    %319 = vmatprep.subr.mxu0 0.0
    %320 = vmatpush2.msra.mxu0 0.0
    %321 = vmatprep.subr.mxu0 0.0
    %322 = vmatpush2.msra.mxu0 0.0
    %323 = vmatprep.mubr.f32.mxu0 0.0
    %324 = vmatmul.mubr.f32.gmra.mxu0 %v234
    %v325 = vpop.f32.mrf.mxu0
    %v326 = vadd.f32 %v257, %v325
    %v327 = vpop.f32.mrf.mxu0
    %328 = vmatprep.mubr.f32.mxu0 0.0
    %329 = vmatmul.mubr.f32.gmra.mxu0 %v235
    %v330 = vpop.f32.mrf.mxu0
    %v331 = vadd.f32 %v257, %v330
    %v332 = vpop.f32.mrf.mxu0
    %333 = vdwg.mxu0
    %334 = vst.msk [vmem:[#allocation2] sm:$0xff] %vm43, %v326
    %335 = vst.msk [vmem:[#allocation2 + $0x8] sm:$0xff] %vm43, %v331
    // Predicated region
    $region34: #{tpu_custom_call.1} parent=1 // pred_check
      _
    $region35: #{tpu_custom_call.1} parent=1 // pred_check_branch
      %337 = sbr.rel (0) target = $region37
    $region36: #{tpu_custom_call.1} parent=1 // pred_region
      %s339 = ssub.s32 256, 256
      %340 = vsyncadd [#allocation3], %s339
      %s341 = sshll.u32 [#allocation2], 4
      %s342 = int_to_ptr.vmem [resolvable:$true] %s341
      %347 = dma.vmem_to_hbm [thread:$0]  %s342, 256, %s8, [#allocation3], 128, 128, 8
    $region37: #{tpu_custom_call.1} parent=1 // pred_fallthru
      _
    // Predicated region
    $region38: #{tpu_custom_call.1} parent=1 // pred_check
      _
    $region39: #{tpu_custom_call.1} parent=1 // pred_check_branch
      %349 = sbr.rel (0) target = $region41
    $region40: #{tpu_custom_call.1} parent=1 // pred_region
      %350 = dma.done [#allocation3], 256
    $region41: #{tpu_custom_call.1} parent=1 // pred_fallthru
      _
    %351 = vsyncpa [#allocation3], 1

</llo_original>
